<compile_context>
chip_gen: v5e
topology: v5e:2x2
jax: 0.10.0
libtpu: 0.0.40
codegen_flags: <defaults>
</compile_context>

<pallas_src>
import functools
from typing import NamedTuple

import numpy as np
import jax
import jax.numpy as jnp
from jax.experimental import pallas as pl
from jax.experimental.pallas import tpu as pltpu


class RayBundle(NamedTuple):
    origins: jax.Array      # (B, H, W, 3)
    directions: jax.Array   # (B, H, W, 3)
    lengths: jax.Array      # (B, H, W, n_pts_per_ray)
    xys: jax.Array          # (B, H, W, 2)


# ----------------------------------------------------------------------------
# Pallas kernel: ray directions, emitted directly in interleaved (ray-major,
# component-minor) lane order so the channels-last reshape is free.
# ----------------------------------------------------------------------------
def _dir_kernel(cam_ref,   # SMEM (B*16,): fx,fy,px,py, tx,ty,tz, R00..R22 per camera
                xy_ref,    # VMEM (2, TR, 384): NDC x / y, each ray replicated x3 on lanes
                sel_ref,   # VMEM (3, 1, 384): exact 0/1 one-hot masks for c = lane % 3
                out_ref,   # VMEM (1, TR, 384): interleaved world-space directions
                *,
                unit_directions: bool):
    b = pl.program_id(1)
    base = b * 16

    # Per-camera scalar work (SMEM reads, reciprocals) hoisted off the vector path.
    inv_fx = 1.0 / cam_ref[base + 0]
    inv_fy = 1.0 / cam_ref[base + 1]
    px = cam_ref[base + 2]
    py = cam_ref[base + 3]
    r00 = cam_ref[base + 7]
    r01 = cam_ref[base + 8]
    r02 = cam_ref[base + 9]
    r10 = cam_ref[base + 10]
    r11 = cam_ref[base + 11]
    r12 = cam_ref[base + 12]
    r20 = cam_ref[base + 13]
    r21 = cam_ref[base + 14]
    r22 = cam_ref[base + 15]

    s0 = sel_ref[0]          # (1, 384), exactly 0.0 / 1.0
    s1 = sel_ref[1]
    s2 = sel_ref[2]
    # Rotation rows spread onto the interleaved lane layout (exact: one-hot masks),
    # so lane j sees R[j % 3, :].
    rc0 = r00 * s0 + r10 * s1 + r20 * s2
    rc1 = r01 * s0 + r11 * s1 + r21 * s2
    rc2 = r02 * s0 + r12 * s1 + r22 * s2

    xcn = (xy_ref[0] - px) * inv_fx      # X_cam at z = 1, (TR, 384)
    ycn = (xy_ref[1] - py) * inv_fy      # Y_cam at z = 1

    # dirs = plane2 - plane1 = R @ [xc, yc, 1]; each lane keeps its own component.
    d = rc0 * xcn + rc1 * ycn + rc2
    if unit_directions:
        # Norm computed per-lane from all three components (no cross-lane ops).
        d0 = r00 * xcn + r01 * ycn + r02
        d1 = r10 * xcn + r11 * ycn + r12
        d2 = r20 * xcn + r21 * ycn + r22
        d = d * (1.0 / jnp.sqrt(d0 * d0 + d1 * d1 + d2 * d2))

    # Dense, unmasked 384-lane store; (B, RN, 384) reshapes for free to (B, H, W, 3).
    out_ref[0] = d.astype(out_ref.dtype)


# ----------------------------------------------------------------------------
# Raysampler (nn.Module analogue): static buffers built once in __init__.
# ----------------------------------------------------------------------------
class DepthBasedRaysamplerPallas:
    """Pallas TPU forward pass of DepthBasedMultinomialRaysampler (full-grid path)."""

    def __init__(self, *, min_x, max_x, min_y, max_y, image_width, image_height,
                 unit_directions: bool = False, row_tile: int = 512,
                 out_dtype=jnp.float32):
        self._unit_directions = bool(unit_directions)
        self._out_dtype = out_dtype
        H, W = image_height, image_width
        self._H, self._W = H, W
        N = H * W
        assert N % 128 == 0, "H*W must be a multiple of 128 for the lane-dense layout"
        RN = N // 128
        self._RN = RN

        # --- static buffers (hoisted out of the per-call path) ------------------
        # xy grid in the module's convention: xy_grid[h, w] = (x_w, y_h)
        y = jnp.linspace(min_y, max_y, H, dtype=jnp.float32)
        x = jnp.linspace(min_x, max_x, W, dtype=jnp.float32)
        yy, xx = jnp.meshgrid(y, x, indexing="ij")
        self._xy_grid = jnp.stack([xx, yy], axis=-1)                    # (H, W, 2)

        # Interleaved lane layout: row r of 384 lanes covers rays r*128..r*128+127;
        # lane j holds ray r*128 + j//3 (its component j%3 is selected in-kernel).
        x_flat = self._xy_grid[..., 0].reshape(N)
        y_flat = self._xy_grid[..., 1].reshape(N)
        self._xy_ilv = jnp.stack(
            [jnp.repeat(x_flat, 3), jnp.repeat(y_flat, 3)], axis=0
        ).reshape(2, RN, 384)                                           # (2, RN, 384)

        lane = jnp.arange(384, dtype=jnp.int32)
        self._sel = (lane[None, :] % 3 == jnp.arange(3, dtype=jnp.int32)[:, None]
                     ).astype(jnp.float32).reshape(3, 1, 384)           # (3, 1, 384)

        # --- tiling: fixed row tile, cdiv grid (Pallas handles the ragged tail) --
        # row_tile=512 keeps the pipeline near the HBM roofline; raise to
        # 1024-2048 on v7x (faster HBM); the vmem_limit below covers v5e then.
        if RN <= row_tile:
            self._TR = RN
        else:
            self._TR = max(8, (row_tile // 8) * 8)
        self._num_tiles = pl.cdiv(RN, self._TR)

        # Tile axis megacore-parallel; batch is the inner, non-sharded loop so the
        # shared xy tile stays resident across cameras (no re-DMA per camera).
        out_isz = np.dtype(out_dtype).itemsize
        per_step = self._TR * 384 * (2 * 4 + out_isz)        # xy block + out block
        vmem_need = 2 * per_step + (1 << 20)                  # double-buffered + slack
        cp = dict(dimension_semantics=("parallel", "arbitrary"))
        if vmem_need > (16 << 20):                            # v5e scoped default
            cp["vmem_limit_bytes"] = int(min(vmem_need + (8 << 20), 64 << 20))
        self._compiler_params = pltpu.CompilerParams(**cp)

    def __call__(self, cam_table, depth_channel) -> RayBundle:
        """cam_table: (B, 16) f32 = [fx, fy, px, py, T(3), R(9, row-major)];
        depth_channel: (B, n_pts_per_ray, H, W) NCHW."""
        B = cam_table.shape[0]
        H, W, RN = self._H, self._W, self._RN
        cam_table = cam_table.astype(jnp.float32)
        cam_flat = cam_table.reshape(B * 16)      # 1-D SMEM table: no (8,128) padding

        kernel = functools.partial(_dir_kernel,
                                   unit_directions=self._unit_directions)
        dirs_ilv = pl.pallas_call(
            kernel,
            out_shape=jax.ShapeDtypeStruct((B, RN, 384), self._out_dtype),
            grid_spec=pltpu.PrefetchScalarGridSpec(
                num_scalar_prefetch=1,                         # cam_flat -> SMEM
                grid=(self._num_tiles, B),                     # batch innermost
                in_specs=[
                    pl.BlockSpec((2, self._TR, 384), lambda n, b, cam: (0, n, 0)),
                    pl.BlockSpec((3, 1, 384), lambda n, b, cam: (0, 0, 0)),
                ],
                out_specs=pl.BlockSpec((1, self._TR, 384),
                                       lambda n, b, cam: (b, n, 0)),
            ),
            compiler_params=self._compiler_params,
        )(cam_flat, self._xy_ilv, self._sel)

        # Free (no-copy) reshape: lanes are already ray-major / component-minor.
        directions = dirs_ilv.reshape(B, H, W, 3)

        # origins = plane1 - (plane2 - plane1) == -R @ T : constant per camera.
        R = cam_table[:, 7:16].reshape(B, 3, 3)
        T = cam_table[:, 4:7]
        cam_centers = -jnp.einsum("bij,bj->bi", R, T,
                                  precision=jax.lax.Precision.HIGHEST)   # (B, 3)
        origins = jnp.broadcast_to(
            cam_centers.astype(self._out_dtype)[:, None, None, :], (B, H, W, 3))

        # rearrange 'b n h w -> b (h w) n' + view == NCHW -> NHWC.
        # TODO(synk): for realistic n_pts this transpose moves far more HBM bytes
        # than the direction kernel; keep depth_channel channels-last upstream (or
        # consume NCHW downstream) to remove it -- left in XLA here to preserve the
        # module's I/O contract.
        lengths = jnp.transpose(depth_channel, (0, 2, 3, 1))

        xys = jnp.broadcast_to(self._xy_grid[None], (B, H, W, 2))
        # TODO(synk): mask / n_rays_per_image / n_rays_total multinomial subsampling,
        # stratified_sampling and HeterogeneousRayBundle are not exercised by this
        # depth_channel forward path and are not implemented here.
        return RayBundle(origins, directions, lengths, xys)


# ----------------------------------------------------------------------------
# Deterministic setup helpers
# ----------------------------------------------------------------------------
def _rotation_matrices(angles):
    ax, ay, az = angles[:, 0], angles[:, 1], angles[:, 2]
    cx, sx = jnp.cos(ax), jnp.sin(ax)
    cy, sy = jnp.cos(ay), jnp.sin(ay)
    cz, sz = jnp.cos(az), jnp.sin(az)
    z = jnp.zeros_like(cx)
    o = jnp.ones_like(cx)
    Rx = jnp.stack([o, z, z, z, cx, -sx, z, sx, cx], -1).reshape(-1, 3, 3)
    Ry = jnp.stack([cy, z, sy, z, o, z, -sy, z, cy], -1).reshape(-1, 3, 3)
    Rz = jnp.stack([cz, -sz, z, sz, cz, z, z, z, o], -1).reshape(-1, 3, 3)
    return jnp.einsum("bij,bjk,bkl->bil", Rz, Ry, Rx,
                      precision=jax.lax.Precision.HIGHEST)


def make_camera_table(key, batch_size):
    k1, k2, k3 = jax.random.split(key, 3)
    angles = jax.random.uniform(k1, (batch_size, 3), minval=-0.3, maxval=0.3)
    T = jax.random.uniform(k2, (batch_size, 3), minval=-1.0, maxval=1.0)
    focal = 1.0 + jax.random.uniform(k3, (batch_size, 2), minval=0.0, maxval=0.5)
    principal = jnp.zeros((batch_size, 2), jnp.float32)
    R = _rotation_matrices(angles)
    return jnp.concatenate(
        [focal, principal, T, R.reshape(batch_size, 9)], axis=-1
    ).astype(jnp.float32)                         # (B, 16)


# ----------------------------------------------------------------------------
# Pure-JAX reference (mirrors _custom_xy_to_ray_bundle with the same camera model)
# ----------------------------------------------------------------------------
def reference_forward(cam_table, xy_grid, depth_channel, *, unit_directions=False):
    B = cam_table.shape[0]
    H, W, _ = xy_grid.shape
    N = H * W
    fx = cam_table[:, None, 0]
    fy = cam_table[:, None, 1]
    px = cam_table[:, None, 2]
    py = cam_table[:, None, 3]
    T = cam_table[:, 4:7]
    R = cam_table[:, 7:16].reshape(B, 3, 3)
    xy = jnp.broadcast_to(xy_grid.reshape(1, N, 2), (B, N, 2))
    xc = (xy[..., 0] - px) / fx
    yc = (xy[..., 1] - py) / fy
    cam1 = jnp.stack([xc, yc, jnp.ones_like(xc)], axis=-1)
    cam2 = 2.0 * cam1
    hi = jax.lax.Precision.HIGHEST
    w1 = jnp.einsum("bij,bnj->bni", R, cam1 - T[:, None, :], precision=hi)
    w2 = jnp.einsum("bij,bnj->bni", R, cam2 - T[:, None, :], precision=hi)
    dirs = w2 - w1
    origins = w1 - dirs
    if unit_directions:
        dirs = dirs / jnp.linalg.norm(dirs, axis=-1, keepdims=True)
    lengths = jnp.transpose(depth_channel, (0, 2, 3, 1))
    xys = jnp.broadcast_to(xy_grid[None], (B, H, W, 2))
    return (origins.reshape(B, H, W, 3), dirs.reshape(B, H, W, 3), lengths, xys)


if __name__ == "__main__":
    B, n_pts, H, W = 2, 8, 16, 16          # depth_channel is NCHW: (B, n_pts, H, W)

    key = jax.random.PRNGKey(0)
    k_depth, k_cam = jax.random.split(key)
    depth_channel = jax.random.uniform(
        k_depth, (B, n_pts, H, W), dtype=jnp.float32, minval=0.5, maxval=5.0)
    cam_table = make_camera_table(k_cam, B)

    # --- unit_directions=False (default module config) ---
    sampler = DepthBasedRaysamplerPallas(
        min_x=-1.0, max_x=1.0, min_y=-1.0, max_y=1.0,
        image_width=W, image_height=H, unit_directions=False)
    bundle = sampler(cam_table, depth_channel)
    jax.block_until_ready(bundle)

    ref_o, ref_d, ref_l, ref_xy = reference_forward(cam_table, sampler._xy_grid,
                                                    depth_channel)
    assert bundle.origins.shape == (B, H, W, 3)
    assert bundle.directions.shape == (B, H, W, 3)
    assert bundle.lengths.shape == (B, H, W, n_pts)
    assert bundle.xys.shape == (B, H, W, 2)
    np.testing.assert_allclose(np.asarray(bundle.origins), np.asarray(ref_o),
                               rtol=1e-5, atol=1e-5)
    np.testing.assert_allclose(np.asarray(bundle.directions), np.asarray(ref_d),
                               rtol=1e-5, atol=1e-5)
    np.testing.assert_allclose(np.asarray(bundle.lengths), np.asarray(ref_l),
                               rtol=1e-6, atol=1e-6)
    np.testing.assert_allclose(np.asarray(bundle.xys), np.asarray(ref_xy),
                               rtol=1e-6, atol=1e-6)

    # --- unit_directions=True (exercise the normalization path) ---
    sampler_u = DepthBasedRaysamplerPallas(
        min_x=-1.0, max_x=1.0, min_y=-1.0, max_y=1.0,
        image_width=W, image_height=H, unit_directions=True)
    bundle_u = sampler_u(cam_table, depth_channel)
    jax.block_until_ready(bundle_u)
    _, ref_du, _, _ = reference_forward(cam_table, sampler._xy_grid, depth_channel,
                                        unit_directions=True)
    np.testing.assert_allclose(np.asarray(bundle_u.directions), np.asarray(ref_du),
                               rtol=2e-5, atol=2e-5)

    print("KERNEL_OK")
</pallas_src>

<mosaic_0001>
module attributes {stable_mosaic.version = 11 : i64} {
  func.func @_dir_kernel(%arg0: i32, %arg1: i32, %arg2: memref<32xf32, #tpu.memory_space<smem>>, %arg3: memref<2x2x384xf32, #tpu.memory_space<vmem>>, %arg4: memref<3x1x384xf32, #tpu.memory_space<vmem>>, %arg5: memref<1x2x384xf32, #tpu.memory_space<vmem>>) attributes {dimension_semantics = [#tpu.dimension_semantics<parallel>, #tpu.dimension_semantics<arbitrary>], iteration_bounds = array<i64: 1, 2>, scalar_prefetch = 1 : i64, scratch_operands = 0 : i64, tpu.core_type = #tpu.core_type<tc>, window_params = [{transform_indices = @transform_0, window_bounds = array<i64: 2, 2, 384>}, {pipeline_mode = #tpu.pipeline_mode<synchronous>, transform_indices = @transform_1, window_bounds = array<i64: 3, 1, 384>}, {transform_indices = @transform_2, window_bounds = array<i64: 1, 2, 384>}]} {
    %c16_i32 = arith.constant 16 : i32
    %0 = arith.muli %arg1, %c16_i32 : i32
    %c0_i32 = arith.constant 0 : i32
    %1 = arith.addi %0, %c0_i32 : i32
    %2 = arith.index_cast %1 : i32 to index
    %3 = memref.load %arg2[%2] : memref<32xf32, #tpu.memory_space<smem>>
    %cst = arith.constant 1.000000e+00 : f32
    %4 = arith.divf %cst, %3 : f32
    %c1_i32 = arith.constant 1 : i32
    %5 = arith.addi %0, %c1_i32 : i32
    %6 = arith.index_cast %5 : i32 to index
    %7 = memref.load %arg2[%6] : memref<32xf32, #tpu.memory_space<smem>>
    %cst_0 = arith.constant 1.000000e+00 : f32
    %8 = arith.divf %cst_0, %7 : f32
    %c2_i32 = arith.constant 2 : i32
    %9 = arith.addi %0, %c2_i32 : i32
    %10 = arith.index_cast %9 : i32 to index
    %11 = memref.load %arg2[%10] : memref<32xf32, #tpu.memory_space<smem>>
    %c3_i32 = arith.constant 3 : i32
    %12 = arith.addi %0, %c3_i32 : i32
    %13 = arith.index_cast %12 : i32 to index
    %14 = memref.load %arg2[%13] : memref<32xf32, #tpu.memory_space<smem>>
    %c7_i32 = arith.constant 7 : i32
    %15 = arith.addi %0, %c7_i32 : i32
    %16 = arith.index_cast %15 : i32 to index
    %17 = memref.load %arg2[%16] : memref<32xf32, #tpu.memory_space<smem>>
    %c8_i32 = arith.constant 8 : i32
    %18 = arith.addi %0, %c8_i32 : i32
    %19 = arith.index_cast %18 : i32 to index
    %20 = memref.load %arg2[%19] : memref<32xf32, #tpu.memory_space<smem>>
    %c9_i32 = arith.constant 9 : i32
    %21 = arith.addi %0, %c9_i32 : i32
    %22 = arith.index_cast %21 : i32 to index
    %23 = memref.load %arg2[%22] : memref<32xf32, #tpu.memory_space<smem>>
    %c10_i32 = arith.constant 10 : i32
    %24 = arith.addi %0, %c10_i32 : i32
    %25 = arith.index_cast %24 : i32 to index
    %26 = memref.load %arg2[%25] : memref<32xf32, #tpu.memory_space<smem>>
    %c11_i32 = arith.constant 11 : i32
    %27 = arith.addi %0, %c11_i32 : i32
    %28 = arith.index_cast %27 : i32 to index
    %29 = memref.load %arg2[%28] : memref<32xf32, #tpu.memory_space<smem>>
    %c12_i32 = arith.constant 12 : i32
    %30 = arith.addi %0, %c12_i32 : i32
    %31 = arith.index_cast %30 : i32 to index
    %32 = memref.load %arg2[%31] : memref<32xf32, #tpu.memory_space<smem>>
    %c13_i32 = arith.constant 13 : i32
    %33 = arith.addi %0, %c13_i32 : i32
    %34 = arith.index_cast %33 : i32 to index
    %35 = memref.load %arg2[%34] : memref<32xf32, #tpu.memory_space<smem>>
    %c14_i32 = arith.constant 14 : i32
    %36 = arith.addi %0, %c14_i32 : i32
    %37 = arith.index_cast %36 : i32 to index
    %38 = memref.load %arg2[%37] : memref<32xf32, #tpu.memory_space<smem>>
    %c15_i32 = arith.constant 15 : i32
    %39 = arith.addi %0, %c15_i32 : i32
    %40 = arith.index_cast %39 : i32 to index
    %41 = memref.load %arg2[%40] : memref<32xf32, #tpu.memory_space<smem>>
    %c0 = arith.constant 0 : index
    %c0_1 = arith.constant 0 : index
    %c0_2 = arith.constant 0 : index
    %42 = vector.load %arg4[%c0, %c0_1, %c0_2] : memref<3x1x384xf32, #tpu.memory_space<vmem>>, vector<1x1x384xf32>
    %43 = vector.shape_cast %42 : vector<1x1x384xf32> to vector<1x384xf32>
    %c1 = arith.constant 1 : index
    %c0_3 = arith.constant 0 : index
    %c0_4 = arith.constant 0 : index
    %44 = vector.load %arg4[%c1, %c0_3, %c0_4] : memref<3x1x384xf32, #tpu.memory_space<vmem>>, vector<1x1x384xf32>
    %45 = vector.shape_cast %44 : vector<1x1x384xf32> to vector<1x384xf32>
    %c2 = arith.constant 2 : index
    %c0_5 = arith.constant 0 : index
    %c0_6 = arith.constant 0 : index
    %46 = vector.load %arg4[%c2, %c0_5, %c0_6] : memref<3x1x384xf32, #tpu.memory_space<vmem>>, vector<1x1x384xf32>
    %47 = vector.shape_cast %46 : vector<1x1x384xf32> to vector<1x384xf32>
    %48 = vector.broadcast %17 : f32 to vector<1x384xf32>
    %49 = arith.mulf %48, %43 : vector<1x384xf32>
    %50 = vector.broadcast %26 : f32 to vector<1x384xf32>
    %51 = arith.mulf %50, %45 : vector<1x384xf32>
    %52 = arith.addf %49, %51 : vector<1x384xf32>
    %53 = vector.broadcast %35 : f32 to vector<1x384xf32>
    %54 = arith.mulf %53, %47 : vector<1x384xf32>
    %55 = arith.addf %52, %54 : vector<1x384xf32>
    %56 = vector.broadcast %20 : f32 to vector<1x384xf32>
    %57 = arith.mulf %56, %43 : vector<1x384xf32>
    %58 = vector.broadcast %29 : f32 to vector<1x384xf32>
    %59 = arith.mulf %58, %45 : vector<1x384xf32>
    %60 = arith.addf %57, %59 : vector<1x384xf32>
    %61 = vector.broadcast %38 : f32 to vector<1x384xf32>
    %62 = arith.mulf %61, %47 : vector<1x384xf32>
    %63 = arith.addf %60, %62 : vector<1x384xf32>
    %64 = vector.broadcast %23 : f32 to vector<1x384xf32>
    %65 = arith.mulf %64, %43 : vector<1x384xf32>
    %66 = vector.broadcast %32 : f32 to vector<1x384xf32>
    %67 = arith.mulf %66, %45 : vector<1x384xf32>
    %68 = arith.addf %65, %67 : vector<1x384xf32>
    %69 = vector.broadcast %41 : f32 to vector<1x384xf32>
    %70 = arith.mulf %69, %47 : vector<1x384xf32>
    %71 = arith.addf %68, %70 : vector<1x384xf32>
    %c0_7 = arith.constant 0 : index
    %c0_8 = arith.constant 0 : index
    %c0_9 = arith.constant 0 : index
    %72 = vector.load %arg3[%c0_7, %c0_8, %c0_9] : memref<2x2x384xf32, #tpu.memory_space<vmem>>, vector<1x2x384xf32>
    %73 = vector.shape_cast %72 : vector<1x2x384xf32> to vector<2x384xf32>
    %74 = vector.broadcast %11 : f32 to vector<2x384xf32>
    %75 = arith.subf %73, %74 : vector<2x384xf32>
    %76 = vector.broadcast %4 : f32 to vector<2x384xf32>
    %77 = arith.mulf %75, %76 : vector<2x384xf32>
    %c1_10 = arith.constant 1 : index
    %c0_11 = arith.constant 0 : index
    %c0_12 = arith.constant 0 : index
    %78 = vector.load %arg3[%c1_10, %c0_11, %c0_12] : memref<2x2x384xf32, #tpu.memory_space<vmem>>, vector<1x2x384xf32>
    %79 = vector.shape_cast %78 : vector<1x2x384xf32> to vector<2x384xf32>
    %80 = vector.broadcast %14 : f32 to vector<2x384xf32>
    %81 = arith.subf %79, %80 : vector<2x384xf32>
    %82 = vector.broadcast %8 : f32 to vector<2x384xf32>
    %83 = arith.mulf %81, %82 : vector<2x384xf32>
    %84 = vector.broadcast %55 : vector<1x384xf32> to vector<2x384xf32>
    %85 = arith.mulf %84, %77 : vector<2x384xf32>
    %86 = vector.broadcast %63 : vector<1x384xf32> to vector<2x384xf32>
    %87 = arith.mulf %86, %83 : vector<2x384xf32>
    %88 = arith.addf %85, %87 : vector<2x384xf32>
    %89 = vector.broadcast %71 : vector<1x384xf32> to vector<2x384xf32>
    %90 = arith.addf %88, %89 : vector<2x384xf32>
    %c0_13 = arith.constant 0 : index
    %c0_14 = arith.constant 0 : index
    %c0_15 = arith.constant 0 : index
    %91 = vector.load %arg5[%c0_13, %c0_14, %c0_15] : memref<1x2x384xf32, #tpu.memory_space<vmem>>, vector<1x2x384xf32>
    %92 = vector.shape_cast %91 : vector<1x2x384xf32> to vector<2x384xf32>
    %93 = vector.shape_cast %90 : vector<2x384xf32> to vector<1x2x384xf32>
    tpu.vector_store %arg5[%c0_13, %c0_14, %c0_15], %93 {strides = array<i32>} : memref<1x2x384xf32, #tpu.memory_space<vmem>>, vector<1x2x384xf32>,
    return
  }
  func.func @transform_0(%arg0: i32, %arg1: i32, %arg2: memref<32xf32, #tpu.memory_space<smem>>) -> (i32, i32, i32) {
    %c0_i32 = arith.constant 0 : i32
    %c0_i32_0 = arith.constant 0 : i32
    %c0_i32_1 = arith.constant 0 : i32
    return %c0_i32, %arg0, %c0_i32_0 : i32, i32, i32
  }
  func.func @transform_1(%arg0: i32, %arg1: i32, %arg2: memref<32xf32, #tpu.memory_space<smem>>) -> (i32, i32, i32) {
    %c0_i32 = arith.constant 0 : i32
    %c0_i32_0 = arith.constant 0 : i32
    %c0_i32_1 = arith.constant 0 : i32
    %c0_i32_2 = arith.constant 0 : i32
    return %c0_i32, %c0_i32_0, %c0_i32_1 : i32, i32, i32
  }
  func.func @transform_2(%arg0: i32, %arg1: i32, %arg2: memref<32xf32, #tpu.memory_space<smem>>) -> (i32, i32, i32) {
    %c0_i32 = arith.constant 0 : i32
    %c0_i32_0 = arith.constant 0 : i32
    return %arg1, %arg0, %c0_i32 : i32, i32, i32
  }
}

</mosaic_0001>

<llo_original>
// kernel: tpu_custom_call.1
$region0: #{tpu_custom_call.1}
  #allocation0 [shape = 'u32[]', space=smem, size = 0x4, offset = 0x4, fixed_abs, tag = 'smem constant byte address 0x4 - core index']
  #allocation1 [shape = 'u32[72,128]{1,0:T(1,128)}', space=vmem, size = 0x9000, scoped, tag = 'internal scratch']
  #allocation2 [shape = 's32[1]{0}', space=sflag, size = 0x4, scoped, tag = 'scoped memory for tpu_custom_call.1']
  #allocation3 [shape = 'u8[512]{0}', space=smem, size = 0x200, scoped, tag = 'prefetched SMEM operand 0']
  %s0 = inlined_call_operand.hbm [shape: f32[32], index: 0, kind: input, shape index: {}]
  %s1 = inlined_call_operand.hbm [shape: f32[2,2,384], index: 1, kind: input, shape index: {}]
  %s2 = inlined_call_operand.hbm [shape: f32[3,1,384], index: 2, kind: input, shape index: {}]
  %s3 = inlined_call_operand.hbm [shape: f32[2,2,384], index: 3, kind: output, shape index: {}]
  %s4 = sld [smem:[#allocation0]]
  $region49: #{tpu_custom_call.1} parent=0
    _
  %s6 = ssub.s32 1, %s4
  %s7 = scalar_select 0, %s6, %s4
  %s9 = sshll.u32 %s0, 4
  %s10 = int_to_ptr.hbm [resolvable:$true] %s9
  %12 = dma.hbm_to_smem %s10, 16, [#allocation3], [#allocation2]
  %14 = dma.done [#allocation2], 16
  %15 = sfence
  $region1: #{tpu_custom_call.1} parent=0
    #allocation4 [shape = 'u8[6144]{0}', space=vmem, size = 0x1800, scoped, tag = 'input window, operand 1, single buffered']
    #allocation5 [shape = 's32[2]{0}', space=sflag, size = 0x8, scoped, tag = 'scoped memory for tpu_custom_call.1']
    #allocation6 [shape = 's32[2]{0}', space=sflag, size = 0x8, scoped, tag = 'scoped memory for tpu_custom_call.1']
    #allocation7 [shape = 'u8[4608]{0}', space=vmem, size = 0x1400, scoped, tag = 'input window, operand 2, single buffered']
    #allocation8 [shape = 's32[1]{0}', space=sflag, size = 0x4, scoped, tag = 'scoped memory for tpu_custom_call.1']
    #allocation9 [shape = 'u8[6144]{0}', space=vmem, size = 0x1800, scoped, tag = 'output window, operand 0']
    %16 = vsyncpa [#allocation5], 0
    %17 = vsyncpa [#allocation8], 0
    %18 = vsyncpa [#allocation6], 0
    %s19 = scalar_lea.sflag [#allocation6], 1
    %20 = vsyncpa %s19, 0
    loop: start=0, step=1, limit=4
    $region2: #{tpu_custom_call.1} parent=1 // loop_pre_header
      _
    $region3: #{tpu_custom_call.1} parent=1 // loop_header
      %s22 = sphi 0, %s26
      %p23 = scmp.ge.s32.totalorder %s22, 4
      %s29 = sphi 0, %s41
      %s30 = sphi 0, %s37
      %s31 = sphi 0, %s29
      %s32 = sphi 0, %s30
      %s33 = sphi 0, %s31
      %s34 = sphi 0, %s32
      %s44 = sphi 0, %s46
      %s47 = sphi 0, %s44
      %s48 = sphi 0, %s47
      %s64 = sphi 0, %s48
      %s68 = sphi 0, %s68
      %s70 = sphi 0, %s68
      %s71 = sphi 0, %s70
      %s85 = sphi 0, %s71
      %s93 = sphi 0, %s95
      %s96 = sphi 0, %s93
      %s97 = sphi 0, %s96
      %s113 = sphi 0, %s97
    $region4: #{tpu_custom_call.1} parent=1 // loop_header_branch
      %25 = sbr.rel (%p23) target = $region8
    $region5: #{tpu_custom_call.1} parent=1 // loop_body
      %s27 = ssub.s32 %s22, 1
      %s28 = ssub.s32 %s22, 2
      %s35 = sadd.s32 1, %s30
      %p36 = scmp.ge.s32.totalorder %s35, 2
      %s37 = scalar_select %p36, 0, %s35
      %s38 = sadd.s32 1, %s29
      %s39 = scalar_select %p36, %s38, %s29
      %p40 = scmp.ge.s32.totalorder %s39, 1
      %s41 = scalar_select %p40, 0, %s39
      %s42 = ssub.s32 %s29, %s41
      %p43 = scmp.eq.s32.totalorder %s42, 0
      %s45 = sadd.s32 %s44, 1
      %s46 = scalar_select %p43, %s44, %s45
      %p49 = pneg %p43
      %p50 = scmp.eq.s32.totalorder %s22, 1
      %p51 = por %p49, %p50
      %p52 = scmp.ne.s32.totalorder %s44, %s47
      %p53 = scmp.eq.s32.totalorder %s22, 0
      %p54 = por %p52, %p53
      %p55 = scmp.ne.s32.totalorder %s44, %s47
      %p56 = scmp.eq.s32.totalorder %s27, 1
      %p57 = por %p55, %p56
      %p58 = scmp.ne.s32.totalorder %s47, %s48
      %p59 = scmp.eq.s32.totalorder %s27, 0
      %p60 = por %p58, %p59
      %p61 = scmp.ne.s32.totalorder %s47, %s48
      %p62 = scmp.eq.s32.totalorder %s28, 1
      %p63 = por %p61, %p62
      %p65 = scmp.ne.s32.totalorder %s48, %s64
      %p66 = scmp.eq.s32.totalorder %s28, 0
      %p67 = por %p65, %p66
      %s69 = sadd.s32 %s68, 1
      %p72 = scmp.eq.s32.totalorder %s22, 1
      %p73 = scmp.ne.s32.totalorder %s68, %s70
      %p74 = scmp.eq.s32.totalorder %s22, 0
      %p75 = por %p73, %p74
      %p76 = scmp.ne.s32.totalorder %s68, %s70
      %p77 = scmp.eq.s32.totalorder %s27, 1
      %p78 = por %p76, %p77
      %p79 = scmp.ne.s32.totalorder %s70, %s71
      %p80 = scmp.eq.s32.totalorder %s27, 0
      %p81 = por %p79, %p80
      %p82 = scmp.ne.s32.totalorder %s70, %s71
      %p83 = scmp.eq.s32.totalorder %s28, 1
      %p84 = por %p82, %p83
      %p86 = scmp.ne.s32.totalorder %s71, %s85
      %p87 = scmp.eq.s32.totalorder %s28, 0
      %p88 = por %p86, %p87
      %s89 = ssub.s32 %s30, %s37
      %s90 = ssub.s32 %s29, %s41
      %s91 = sor.u32 %s89, %s90
      %p92 = scmp.eq.s32.totalorder %s91, 0
      %s94 = sadd.s32 %s93, 1
      %s95 = scalar_select %p92, %s93, %s94
      %p98 = pneg %p92
      %p99 = scmp.eq.s32.totalorder %s22, 1
      %p100 = por %p98, %p99
      %p101 = scmp.ne.s32.totalorder %s93, %s96
      %p102 = scmp.eq.s32.totalorder %s22, 0
      %p103 = por %p101, %p102
      %p104 = scmp.ne.s32.totalorder %s93, %s96
      %p105 = scmp.eq.s32.totalorder %s27, 1
      %p106 = por %p104, %p105
      %p107 = scmp.ne.s32.totalorder %s96, %s97
      %p108 = scmp.eq.s32.totalorder %s27, 0
      %p109 = por %p107, %p108
      %p110 = scmp.ne.s32.totalorder %s96, %s97
      %p111 = scmp.eq.s32.totalorder %s28, 1
      %p112 = por %p110, %p111
      %p114 = scmp.ne.s32.totalorder %s97, %s113
      %p115 = scmp.eq.s32.totalorder %s28, 0
      %p116 = por %p114, %p115
      %p117 = scmp.le.s32.totalorder 1, %s22
      %p118 = scmp.lt.s32.totalorder %s22, 3
      %p119 = pnand %p117, %p118
      %p120 = pneg %p119
      // Predicated region
      $region9: #{tpu_custom_call.1} parent=5 // pred_check
        _
      $region10: #{tpu_custom_call.1} parent=5 // pred_check_branch
        %122 = sbr.rel (%p119) target = $region12
      $region11: #{tpu_custom_call.1} parent=5 // pred_region
        %s123 = ssub.s32 %s22, 1
        // Predicated region
        $region13: #{tpu_custom_call.1} parent=11 // pred_check
          %p124 = pneg %p60
        $region14: #{tpu_custom_call.1} parent=11 // pred_check_branch
          %126 = sbr.rel (%p124) target = $region16
        $region15: #{tpu_custom_call.1} parent=11 // pred_region
          %128 = vsyncadd [#allocation5], 0
          %s129 = smul.addr %s31, 3
          %s130 = smul.addr %s129, 2
          %s131 = scalar_lea.hbm %s1, %s130
          %s132 = sshll.u32 %s131, 4
          %s133 = int_to_ptr.hbm [resolvable:$true] %s132
          %s134 = sshll.u32 [#allocation4], 4
          %s135 = int_to_ptr.vmem [resolvable:$true] %s134
          %140 = dma.hbm_to_vmem [thread:$0]  %s133, 192, %s135, [#allocation5], 96, 96, 6
        $region16: #{tpu_custom_call.1} parent=11 // pred_fallthru
          _
        // Predicated region
        $region17: #{tpu_custom_call.1} parent=11 // pred_check
          %p141 = pneg %p81
        $region18: #{tpu_custom_call.1} parent=11 // pred_check_branch
          %143 = sbr.rel (%p141) target = $region20
        $region19: #{tpu_custom_call.1} parent=11 // pred_region
          %145 = vsyncadd [#allocation8], 0
          %s146 = sshll.u32 %s2, 4
          %s147 = int_to_ptr.hbm [resolvable:$true] %s146
          %s148 = sshll.u32 [#allocation7], 4
          %s149 = int_to_ptr.vmem [resolvable:$true] %s148
          %154 = dma.hbm_to_vmem [thread:$0]  %s147, 144, %s149, [#allocation8], 48, 48, 3
        $region20: #{tpu_custom_call.1} parent=11 // pred_fallthru
          _
      $region12: #{tpu_custom_call.1} parent=5 // pred_fallthru
        _
      %p155 = scmp.lt.s32.totalorder %s22, 2
      // Predicated region
      $region21: #{tpu_custom_call.1} parent=5 // pred_check
        %p156 = pneg %p155
      $region22: #{tpu_custom_call.1} parent=5 // pred_check_branch
        %158 = sbr.rel (%p156) target = $region24
      $region23: #{tpu_custom_call.1} parent=5 // pred_region
        _
      $region24: #{tpu_custom_call.1} parent=5 // pred_fallthru
        _
      %p159 = scmp.le.s32.totalorder 1, %s22
      %p160 = scmp.lt.s32.totalorder %s22, 3
      %p161 = pnand %p159, %p160
      %p162 = pneg %p161
      // Predicated region
      $region25: #{tpu_custom_call.1} parent=5 // pred_check
        _
      $region26: #{tpu_custom_call.1} parent=5 // pred_check_branch
        %164 = sbr.rel (%p161) target = $region28
      $region27: #{tpu_custom_call.1} parent=5 // pred_region
        %s165 = ssub.s32 %s22, 1
        // Predicated region
        $region29: #{tpu_custom_call.1} parent=27 // pred_check
          %p166 = pneg %p60
        $region30: #{tpu_custom_call.1} parent=27 // pred_check_branch
          %168 = sbr.rel (%p166) target = $region32
        $region31: #{tpu_custom_call.1} parent=27 // pred_region
          %170 = dma.done [#allocation5], 192
        $region32: #{tpu_custom_call.1} parent=27 // pred_fallthru
          _
        // Predicated region
        $region33: #{tpu_custom_call.1} parent=27 // pred_check
          %p171 = pneg %p81
        $region34: #{tpu_custom_call.1} parent=27 // pred_check_branch
          %173 = sbr.rel (%p171) target = $region36
        $region35: #{tpu_custom_call.1} parent=27 // pred_region
          %175 = dma.done [#allocation8], 144
        $region36: #{tpu_custom_call.1} parent=27 // pred_fallthru
          _
        %p176 = pneg %p60
        %p177 = pneg %p57
        %p178 = pneg %p81
        %p179 = pneg %p78
        %p180 = pneg %p109
        %p181 = pneg %p106
        %s182 = sand.u32 %s96, 1
        %s183 = scalar_lea.sflag [#allocation6], %s182
        %s184 = sand.u32 %s96, 1
        %s185 = smul.addr %s184, 6
        %s186 = scalar_lea.vmem [#allocation9], %s185
        %s187 = smul.u32 %s32, 16
        %s188 = sld [smem:[#allocation3 + %s187]]
        %v189 = vstv %s188
        %v190 = vrcp.pop %v189
        %v191 = vmul.f32 %v189, %v190
        %v192 = vsub.f32 1.0, %v191
        %v193 = vmul.f32 %v190, %v192
        %v194 = vadd.f32 %v190, %v193
        %vm195 = vweird.f32 %v189
        %vm196 = vweird.f32 %v190
        %vm197 = vmor %vm195, %vm196
        %v198 = vsel %vm197, %v190, %v194
        %v199 = vand.u32 2147483647, %v189
        %vm200 = vcmp.eq.f32.partialorder %v199, 8.507059e+37
        %v201 = vand.u32 %v189, 2147483648
        %v202 = vor.u32 1.1754944e-38, %v201
        %v203 = vsel %vm200, %v202, %v198
        %s204 = vtos %v203
        %s205 = sadd.s32 %s187, 1
        %s206 = sld [smem:[#allocation3 + %s205]]
        %v207 = vstv %s206
        %v208 = vrcp.pop %v207
        %v209 = vmul.f32 %v207, %v208
        %v210 = vsub.f32 1.0, %v209
        %v211 = vmul.f32 %v208, %v210
        %v212 = vadd.f32 %v208, %v211
        %vm213 = vweird.f32 %v207
        %vm214 = vweird.f32 %v208
        %vm215 = vmor %vm213, %vm214
        %v216 = vsel %vm215, %v208, %v212
        %v217 = vand.u32 2147483647, %v207
        %vm218 = vcmp.eq.f32.partialorder %v217, 8.507059e+37
        %v219 = vand.u32 %v207, 2147483648
        %v220 = vor.u32 1.1754944e-38, %v219
        %v221 = vsel %vm218, %v220, %v216
        %s222 = vtos %v221
        %s223 = sadd.s32 %s187, 2
        %s224 = sld [smem:[#allocation3 + %s223]]
        %s225 = sadd.s32 %s187, 3
        %s226 = sld [smem:[#allocation3 + %s225]]
        %s227 = sadd.s32 %s187, 7
        %s228 = sld [smem:[#allocation3 + %s227]]
        %s229 = sadd.s32 %s187, 8
        %s230 = sld [smem:[#allocation3 + %s229]]
        %s231 = sadd.s32 %s187, 9
        %s232 = sld [smem:[#allocation3 + %s231]]
        %s233 = sadd.s32 %s187, 10
        %s234 = sld [smem:[#allocation3 + %s233]]
        %s235 = sadd.s32 %s187, 11
        %s236 = sld [smem:[#allocation3 + %s235]]
        %s237 = sadd.s32 %s187, 12
        %s238 = sld [smem:[#allocation3 + %s237]]
        %s239 = sadd.s32 %s187, 13
        %s240 = sld [smem:[#allocation3 + %s239]]
        %s241 = sadd.s32 %s187, 14
        %s242 = sld [smem:[#allocation3 + %s241]]
        %s243 = sadd.s32 %s187, 15
        %s244 = sld [smem:[#allocation3 + %s243]]
        %v245 = vld [vmem:[#allocation7] sm:$0x7]
        %s246 = scalar_lea.vmem [#allocation7], 3
        %v247 = vld [vmem:[%s246] sm:$0x7]
        %s248 = scalar_lea.vmem [#allocation7], 6
        %v249 = vld [vmem:[%s248] sm:$0x7]
        %v250 = vstv %s228
        %v251 = vmul.f32 %v250, %v245
        %v252 = vstv %s234
        %v253 = vmul.f32 %v252, %v247
        %v254 = vadd.f32 %v251, %v253
        %v255 = vstv %s240
        %v256 = vmul.f32 %v255, %v249
        %v257 = vadd.f32 %v254, %v256
        %v258 = vstv %s230
        %v259 = vmul.f32 %v258, %v245
        %v260 = vstv %s236
        %v261 = vmul.f32 %v260, %v247
        %v262 = vadd.f32 %v259, %v261
        %v263 = vstv %s242
        %v264 = vmul.f32 %v263, %v249
        %v265 = vadd.f32 %v262, %v264
        %v266 = vstv %s232
        %v267 = vmul.f32 %v266, %v245
        %v268 = vstv %s238
        %v269 = vmul.f32 %v268, %v247
        %v270 = vadd.f32 %v267, %v269
        %v271 = vstv %s244
        %v272 = vmul.f32 %v271, %v249
        %v273 = vadd.f32 %v270, %v272
        %v274 = vld [vmem:[#allocation4] sm:$0x3f]
        %v275 = vstv %s224
        %v276 = vsub.f32 %v274, %v275
        %v277 = vstv %s204
        %v278 = vmul.f32 %v276, %v277
        %s279 = scalar_lea.vmem [#allocation4], 6
        %v280 = vld [vmem:[%s279] sm:$0x3f]
        %v281 = vstv %s226
        %v282 = vsub.f32 %v280, %v281
        %v283 = vstv %s222
        %v284 = vmul.f32 %v282, %v283
        %v286 = vperm.slane %v257, 0
        %v287 = vperm.slane %v257, 1
        %v288 = vperm.slane %v257, 2
        %293 = vst [vmem:[#allocation1] ss:$4 sm:$0xff] %v278
        %v294 = vld.sshfl [vmem:[#allocation1] sm:$0xff pattern:$0x73625140]
        %v295 = vld.sshfl [vmem:[#allocation1 + $0x8] sm:$0xff pattern:$0x73625140]
        %v296 = vld.sshfl [vmem:[#allocation1 + $0x10] sm:$0xff pattern:$0x73625140]
        %v300 = vmul.f32 %v286, %v294
        %v301 = vmul.f32 %v287, %v295
        %v302 = vmul.f32 %v288, %v296
        %v304 = vperm.slane %v265, 0
        %v305 = vperm.slane %v265, 1
        %v306 = vperm.slane %v265, 2
        %311 = vst [vmem:[#allocation1] ss:$4 sm:$0xff] %v284
        %v312 = vld.sshfl [vmem:[#allocation1] sm:$0xff pattern:$0x73625140]
        %v313 = vld.sshfl [vmem:[#allocation1 + $0x8] sm:$0xff pattern:$0x73625140]
        %v314 = vld.sshfl [vmem:[#allocation1 + $0x10] sm:$0xff pattern:$0x73625140]
        %v318 = vmul.f32 %v304, %v312
        %v319 = vmul.f32 %v305, %v313
        %v320 = vmul.f32 %v306, %v314
        %v321 = vadd.f32 %v300, %v318
        %v322 = vadd.f32 %v301, %v319
        %v323 = vadd.f32 %v302, %v320
        %v325 = vperm.slane %v273, 0
        %v326 = vperm.slane %v273, 1
        %v327 = vperm.slane %v273, 2
        %v331 = vadd.f32 %v321, %v325
        %v332 = vadd.f32 %v322, %v326
        %v333 = vadd.f32 %v323, %v327
        %v337 = vrot.slane %v332, 6
        %v338 = vrot.slane %v333, 4
        %vm339 = vcmask 1041408
        %v340 = vsel %vm339, %v331, %v337
        %vm341 = vcmask 1043456
        %v342 = vsel %vm341, %v340, %v338
        %344 = vst [vmem:[%s186] sm:$0x3f] %v342
        %s345 = sand.u32 %s96, 1
        %s346 = scalar_lea.sflag [#allocation6], %s345
        %s347 = sand.u32 %s96, 1
        %s348 = smul.addr %s347, 6
        %s349 = scalar_lea.vmem [#allocation9], %s348
        // Predicated region
        $region37: #{tpu_custom_call.1} parent=27 // pred_check
          %p350 = pneg %p106
        $region38: #{tpu_custom_call.1} parent=27 // pred_check_branch
          %352 = sbr.rel (%p350) target = $region40
        $region39: #{tpu_custom_call.1} parent=27 // pred_region
          %354 = vsyncadd %s346, 0
          %s355 = smul.addr %s31, 3
          %s356 = smul.addr %s32, 3
          %s357 = sadd.s32 %s355, %s356
          %s358 = smul.addr %s357, 2
          %s359 = scalar_lea.hbm %s3, %s358
          %s361 = sshll.u32 %s349, 4
          %s362 = int_to_ptr.vmem [resolvable:$true] %s361
          %s363 = sshll.u32 %s359, 4
          %s364 = int_to_ptr.hbm [resolvable:$true] %s363
          %366 = dma.vmem_to_hbm [thread:$0]  %s362, 96, %s364, %s346
        $region40: #{tpu_custom_call.1} parent=27 // pred_fallthru
          _
      $region28: #{tpu_custom_call.1} parent=5 // pred_fallthru
        _
      %p367 = scmp.le.s32.totalorder 2, %s22
      // Predicated region
      $region41: #{tpu_custom_call.1} parent=5 // pred_check
        %p368 = pneg %p367
      $region42: #{tpu_custom_call.1} parent=5 // pred_check_branch
        %370 = sbr.rel (%p368) target = $region44
      $region43: #{tpu_custom_call.1} parent=5 // pred_region
        %s371 = ssub.s32 %s22, 2
        // Predicated region
        $region45: #{tpu_custom_call.1} parent=43 // pred_check
          %p372 = pneg %p112
        $region46: #{tpu_custom_call.1} parent=43 // pred_check_branch
          %374 = sbr.rel (%p372) target = $region48
        $region47: #{tpu_custom_call.1} parent=43 // pred_region
          %s375 = sand.u32 %s97, 1
          %s376 = scalar_lea.sflag [#allocation6], %s375
          %s377 = sand.u32 %s97, 1
          %s378 = smul.addr %s377, 6
          %s379 = scalar_lea.vmem [#allocation9], %s378
          %381 = dma.done %s376, 96
        $region48: #{tpu_custom_call.1} parent=43 // pred_fallthru
          _
      $region44: #{tpu_custom_call.1} parent=5 // pred_fallthru
        _
    $region6: #{tpu_custom_call.1} parent=1 // loop_footer
      %s26 = sadd.s32 1, %s22
    $region7: #{tpu_custom_call.1} parent=1 // loop_footer_branch
      %21 = sbr.rel target = $region3
    $region8: #{tpu_custom_call.1} parent=1 // loop_exit
      _
    %382 = vsyncpa [#allocation5], 1
    %s383 = scalar_lea.sflag [#allocation5], 1
    %384 = vsyncpa %s383, 1
    %385 = vsyncpa [#allocation8], 1
    %386 = vsyncpa [#allocation6], 1
    %s387 = scalar_lea.sflag [#allocation6], 1
    %388 = vsyncpa %s387, 1

</llo_original>
